<compile_context>
chip_gen: v7x
topology: tpu7x:2x2x1
jax: 0.10.0
libtpu: 0.0.40
codegen_flags: <defaults>
</compile_context>

<pallas_src>
import functools

import jax
import jax.numpy as jnp
import numpy as np
from jax.experimental import pallas as pl
from jax.experimental.pallas import tpu as pltpu

NORM_EPS = 1e-12                   # torch F.normalize default eps
INPUT_DTYPE = jnp.bfloat16         # HBM stream dtype (f32 math in-kernel)
_LANE = 128


# ----------------------------- in-kernel helpers -----------------------------
def _l2_normalize_cols(x):
    # x: (D, N).  Matches F.normalize(x, 2, dim): x / max(||x||, eps),
    # implemented as a single EUP rsqrt on max(sumsq, eps^2).
    ssq = jnp.sum(x * x, axis=0, keepdims=True)                 # (1, N)
    inv = jax.lax.rsqrt(jnp.maximum(ssq, NORM_EPS * NORM_EPS))
    return x * inv


def _pnorm_cols(x, p):
    # column-wise p-norm of x: (D, N) -> (1, N); matches torch.norm(., p, dim=1)
    if p == 2.0:
        return jnp.sqrt(jnp.sum(x * x, axis=0, keepdims=True))
    if p == 1.0:
        return jnp.sum(jnp.abs(x), axis=0, keepdims=True)
    s = jnp.sum(jnp.power(jnp.abs(x), p), axis=0, keepdims=True)
    return jnp.power(s, 1.0 / p)


# --------------------------------- kernels -----------------------------------
def triplet_kernel(ph_ref, pr_ref, pt_ref, nh_ref, nr_ref, nt_ref, out_ref, *, p):
    """TransE losses for one batch tile.  Inputs are (D, TB) bf16; out (2, TB) f32."""
    # Cast to f32 right after load (no bf16 VPU on v5e); no concat/slice copies.
    ph = _l2_normalize_cols(ph_ref[...].astype(jnp.float32))
    pt = _l2_normalize_cols(pt_ref[...].astype(jnp.float32))
    nh = _l2_normalize_cols(nh_ref[...].astype(jnp.float32))
    nt = _l2_normalize_cols(nt_ref[...].astype(jnp.float32))
    pos = ph + pr_ref[...].astype(jnp.float32) - pt
    neg = nh + nr_ref[...].astype(jnp.float32) - nt
    out_ref[0:1, :] = _pnorm_cols(pos, p)   # lane-dense (1, TB) store
    out_ref[1:2, :] = _pnorm_cols(neg, p)   # lane-dense (1, TB) store


def relpair_kernel(rph_ref, rpt_ref, transT_ref, out_ref, *, p):
    """Relation-pair losses for one pair tile.

    rph_ref/rpt_ref: (D, TP) bf16; transT_ref: (D, D) f32 = trans.T (resident);
    out: (2, TP) f32.
    """
    rph = _l2_normalize_cols(rph_ref[...].astype(jnp.float32))
    rpt = _l2_normalize_cols(rpt_ref[...].astype(jnp.float32))
    tT = transT_ref[...]                    # resident f32 transfer matrix
    # f32 dots: tiny (D x D x TP), nowhere near MXU-bound; avoids unsupported
    # bf16xbf16 paths and keeps full accuracy.
    proj_h = jnp.dot(tT, rph, preferred_element_type=jnp.float32)   # (D, TP)
    proj_t = jnp.dot(tT, rpt, preferred_element_type=jnp.float32)   # (D, TP)
    out_ref[0:1, :] = _pnorm_cols(proj_h - rpt, p)
    out_ref[1:2, :] = _pnorm_cols(proj_t - rph, p)


# --------------------------------- wrappers -----------------------------------
def _round_up(x, m):
    return ((x + m - 1) // m) * m


def _vmem_budgets():
    """(tile_budget_bytes, vmem_limit_bytes), generation aware."""
    try:
        cap = int(getattr(pltpu.get_tpu_info(), "vmem_capacity_bytes"))
    except Exception:
        cap = 64 * 1024 * 1024          # conservative (v7x-sized) default
    if cap <= 64 * 1024 * 1024:         # v7x: 64 MiB / TensorCore
        return 24 * 1024 * 1024, 48 * 1024 * 1024
    return 48 * 1024 * 1024, 64 * 1024 * 1024   # v5e / v6e: 128 MiB


def _pick_tile(dim, n_in_streams, in_bytes, work_streams_f32,
               budget_bytes, resident_bytes=0, max_tile=2048):
    """Largest lane tile (power-of-2 multiple of 128) whose FULL working set
    (double-buffered inputs + double-buffered output + resident arrays +
    in-kernel f32 intermediates) stays under budget."""
    per_lane = (n_in_streams * 2 * dim * in_bytes     # double-buffered input tiles
                + 2 * 2 * 4                           # double-buffered (2, T) f32 output
                + work_streams_f32 * dim * 4)         # in-kernel f32 intermediates
    tile = _LANE
    while (tile * 2 <= max_tile
           and resident_bytes + per_lane * (tile * 2) <= budget_bytes):
        tile *= 2
    return tile


def _split_for_cores(tile, n_lane):
    """Give the 'parallel' grid at least 2 steps so v7x's 2 TensorCores both work."""
    if n_lane >= 2 * _LANE:
        tile = min(tile, _round_up(-(-n_lane // 2), _LANE))
    return max(tile, _LANE)


def _pad_rows(x, d_pad):
    pad = d_pad - x.shape[0]
    return x if pad == 0 else jnp.pad(x, ((0, pad), (0, 0)))


def compute_trans(relation_trans):
    # Hoisted out of the per-step forward: depends only on parameters.
    # TODO(synk): np.linalg.pinv (SVD) has no clean Pallas equivalent.
    return relation_trans @ jnp.linalg.pinv(relation_trans)


@functools.partial(jax.jit, static_argnames=("norm",))
def transmit_forward(entity_emb, relation_emb, trans,
                     pos_h, pos_r, pos_t, neg_h, neg_r, neg_t,
                     rel_pair_h, rel_pair_t, *, norm):
    p = float(norm)
    D = entity_emb.shape[1]
    B = pos_h.shape[0]
    P = rel_pair_h.shape[0]
    D_pad = _round_up(D, 16)          # clean bf16 sublane packing; zeros are inert

    tile_budget, vmem_limit = _vmem_budgets()
    params = pltpu.CompilerParams(dimension_semantics=("parallel",),
                                  vmem_limit_bytes=vmem_limit)

    # ---- glue: pad indices (cheap), gather, cast to bf16, feature-major ------
    # TODO(synk): verify gather + cast + transpose fuse in HLO; for very large
    # batches the gather could move in-kernel (PrefetchScalarGridSpec + DMA).
    def gather_t(table, idx, n_pad):
        if idx.shape[0] != n_pad:
            idx = jnp.pad(idx, (0, n_pad - idx.shape[0]))   # pad indices, not data
        g = jnp.take(table, idx, axis=0)                    # (n_pad, D)
        return _pad_rows(g.T.astype(INPUT_DTYPE), D_pad)    # (D_pad, n_pad) bf16

    # ---------------------- triplet (TransE) losses ---------------------------
    B_lane = _round_up(B, _LANE)
    TB = min(_pick_tile(D_pad, n_in_streams=6, in_bytes=2, work_streams_f32=8,
                        budget_bytes=tile_budget), B_lane)
    TB = _split_for_cores(TB, B_lane)
    B_pad = _round_up(B, TB)

    pH = gather_t(entity_emb, pos_h, B_pad)
    pR = gather_t(relation_emb, pos_r, B_pad)
    pT = gather_t(entity_emb, pos_t, B_pad)
    nH = gather_t(entity_emb, neg_h, B_pad)
    nR = gather_t(relation_emb, neg_r, B_pad)
    nT = gather_t(entity_emb, neg_t, B_pad)

    tile_spec = pl.BlockSpec((D_pad, TB), lambda i: (0, i))
    tri_cost = pl.CostEstimate(
        flops=int(22 * D_pad * B_pad),
        transcendentals=int(6 * B_pad),
        bytes_accessed=int(6 * D_pad * B_pad * 2 + 2 * B_pad * 4))
    tri_out = pl.pallas_call(
        functools.partial(triplet_kernel, p=p),
        out_shape=jax.ShapeDtypeStruct((2, B_pad), jnp.float32),
        grid=(B_pad // TB,),
        in_specs=[tile_spec] * 6,
        out_specs=pl.BlockSpec((2, TB), lambda i: (0, i)),
        compiler_params=params,
        cost_estimate=tri_cost,
    )(pH, pR, pT, nH, nR, nT)
    positive_loss = tri_out[0, :B]
    negative_loss = tri_out[1, :B]

    # ----------------- relation-pair losses (projection matmul) ---------------
    P_lane = _round_up(P, _LANE)
    resident = D_pad * D_pad * 4                     # resident f32 transT
    TP = min(_pick_tile(D_pad, n_in_streams=2, in_bytes=2, work_streams_f32=6,
                        budget_bytes=tile_budget, resident_bytes=resident),
             P_lane)
    TP = _split_for_cores(TP, P_lane)
    P_pad = _round_up(P, TP)

    rph = gather_t(relation_emb, rel_pair_h, P_pad)
    rpt = gather_t(relation_emb, rel_pair_t, P_pad)

    transT = trans.T.astype(jnp.float32)             # (D, D) f32, stays f32
    if D_pad != D:
        transT = jnp.pad(transT, ((0, D_pad - D), (0, D_pad - D)))

    pair_spec = pl.BlockSpec((D_pad, TP), lambda i: (0, i))
    pair_cost = pl.CostEstimate(
        flops=int(4 * D_pad * D_pad * P_pad + 14 * D_pad * P_pad),
        transcendentals=int(4 * P_pad),
        bytes_accessed=int(2 * D_pad * P_pad * 2 + D_pad * D_pad * 4
                           + 2 * P_pad * 4))
    pair_out = pl.pallas_call(
        functools.partial(relpair_kernel, p=p),
        out_shape=jax.ShapeDtypeStruct((2, P_pad), jnp.float32),
        grid=(P_pad // TP,),
        in_specs=[pair_spec, pair_spec,
                  # constant index_map -> trans stays resident in VMEM
                  pl.BlockSpec((D_pad, D_pad), lambda i: (0, 0))],
        out_specs=pl.BlockSpec((2, TP), lambda i: (0, i)),
        compiler_params=params,
        cost_estimate=pair_cost,
    )(rph, rpt, transT)
    pos_pair_loss = pair_out[0, :P]
    neg_pair_loss = pair_out[1, :P]

    return positive_loss, negative_loss, pos_pair_loss, neg_pair_loss


# ------------------------------ params / reference ----------------------------
def init_params(key, num_entity, num_relation, ent_dim, rel_dim):
    k1, k2, k3 = jax.random.split(key, 3)
    sqrtR = rel_dim ** 0.5
    sqrtE = ent_dim ** 0.5
    rel = jax.random.uniform(k1, (num_relation, rel_dim),
                             minval=-6.0 / sqrtR, maxval=6.0 / sqrtR,
                             dtype=jnp.float32)
    rel = rel / jnp.maximum(jnp.linalg.norm(rel, axis=1, keepdims=True), NORM_EPS)
    ent = jax.random.uniform(k2, (num_entity, ent_dim),
                             minval=-6.0 / sqrtE, maxval=6.0 / sqrtE,
                             dtype=jnp.float32)
    ent = ent / jnp.maximum(jnp.linalg.norm(ent, axis=1, keepdims=True), NORM_EPS)
    rtrans = jax.random.uniform(k3, (rel_dim, rel_dim),
                                minval=-6.0 / sqrtE, maxval=6.0 / sqrtE,
                                dtype=jnp.float32)
    rtrans = rtrans / jnp.maximum(
        jnp.linalg.norm(rtrans, axis=1, keepdims=True), NORM_EPS)
    return ent, rel, rtrans


def _reference(entity_emb, relation_emb, trans, norm,
               pos_h, pos_r, pos_t, neg_h, neg_r, neg_t,
               rel_pair_h, rel_pair_t):
    def l2n(x):
        n = jnp.linalg.norm(x, axis=1, keepdims=True)
        return x / jnp.maximum(n, NORM_EPS)

    def pnorm(x):
        return jnp.sum(jnp.abs(x) ** norm, axis=1) ** (1.0 / norm)

    pH, pR, pT = l2n(entity_emb[pos_h]), relation_emb[pos_r], l2n(entity_emb[pos_t])
    nH, nR, nT = l2n(entity_emb[neg_h]), relation_emb[neg_r], l2n(entity_emb[neg_t])
    rph, rpt = l2n(relation_emb[rel_pair_h]), l2n(relation_emb[rel_pair_t])
    return (pnorm(pH + pR - pT), pnorm(nH + nR - nT),
            pnorm(rph @ trans - rpt), pnorm(rpt @ trans - rph))


# ------------------------------------ main ------------------------------------
if __name__ == "__main__":
    num_entity, num_relation = 32, 16
    ent_dim = rel_dim = 32            # forward requires ent_dim == rel_dim
    batch, pair_batch = 8, 8
    norm = 2

    key = jax.random.PRNGKey(0)
    kp, ki = jax.random.split(key)
    entity_emb, relation_emb, relation_trans = init_params(
        kp, num_entity, num_relation, ent_dim, rel_dim)

    ks = jax.random.split(ki, 8)
    pos_h = jax.random.randint(ks[0], (batch,), 0, num_entity)
    pos_r = jax.random.randint(ks[1], (batch,), 0, num_relation)
    pos_t = jax.random.randint(ks[2], (batch,), 0, num_entity)
    neg_h = jax.random.randint(ks[3], (batch,), 0, num_entity)
    neg_r = jax.random.randint(ks[4], (batch,), 0, num_relation)
    neg_t = jax.random.randint(ks[5], (batch,), 0, num_entity)
    rel_pair_h = jax.random.randint(ks[6], (pair_batch,), 0, num_relation)
    rel_pair_t = jax.random.randint(ks[7], (pair_batch,), 0, num_relation)

    # trans is parameter-only: computed once, outside the per-step forward.
    trans = compute_trans(relation_trans)

    outs = transmit_forward(entity_emb, relation_emb, trans,
                            pos_h, pos_r, pos_t, neg_h, neg_r, neg_t,
                            rel_pair_h, rel_pair_t, norm=norm)
    outs = jax.block_until_ready(outs)

    # shapes match the torch forward: ((B,), (B,), (P,), (P,))
    assert outs[0].shape == (batch,) and outs[1].shape == (batch,)
    assert outs[2].shape == (pair_batch,) and outs[3].shape == (pair_batch,)

    # numerical check vs a pure-JAX f32 reference (bf16 input streams -> loose tol)
    refs = _reference(entity_emb, relation_emb, trans, norm,
                      pos_h, pos_r, pos_t, neg_h, neg_r, neg_t,
                      rel_pair_h, rel_pair_t)
    for got, want in zip(outs, refs):
        np.testing.assert_allclose(np.asarray(got), np.asarray(want),
                                   rtol=2e-2, atol=2e-2)

    print("KERNEL_OK")
</pallas_src>

<mosaic_0001>
module attributes {stable_mosaic.version = 11 : i64} {
  func.func @triplet_kernel(%arg0: i32, %arg1: memref<32x128xbf16, #tpu.memory_space<vmem>>, %arg2: memref<32x128xbf16, #tpu.memory_space<vmem>>, %arg3: memref<32x128xbf16, #tpu.memory_space<vmem>>, %arg4: memref<32x128xbf16, #tpu.memory_space<vmem>>, %arg5: memref<32x128xbf16, #tpu.memory_space<vmem>>, %arg6: memref<32x128xbf16, #tpu.memory_space<vmem>>, %arg7: memref<2x128xf32, #tpu.memory_space<vmem>>) attributes {dimension_semantics = [#tpu.dimension_semantics<parallel>], iteration_bounds = array<i64: 1>, scalar_prefetch = 0 : i64, scratch_operands = 0 : i64, tpu.core_type = #tpu.core_type<tc>, window_params = [{transform_indices = @transform_0, window_bounds = array<i64: 32, 128>}, {transform_indices = @transform_1, window_bounds = array<i64: 32, 128>}, {transform_indices = @transform_2, window_bounds = array<i64: 32, 128>}, {transform_indices = @transform_3, window_bounds = array<i64: 32, 128>}, {transform_indices = @transform_4, window_bounds = array<i64: 32, 128>}, {transform_indices = @transform_5, window_bounds = array<i64: 32, 128>}, {transform_indices = @transform_6, window_bounds = array<i64: 2, 128>}]} {
    %c0 = arith.constant 0 : index
    %c0_0 = arith.constant 0 : index
    %0 = vector.load %arg1[%c0, %c0_0] : memref<32x128xbf16, #tpu.memory_space<vmem>>, vector<32x128xbf16>
    %1 = arith.extf %0 : vector<32x128xbf16> to vector<32x128xf32>
    %2 = arith.mulf %1, %1 : vector<32x128xf32>
    %cst = arith.constant dense<0.000000e+00> : vector<128xf32>
    %3 = vector.multi_reduction <add>, %2, %cst [0] : vector<32x128xf32> to vector<128xf32>
    %4 = vector.shape_cast %3 : vector<128xf32> to vector<1x128xf32>
    %cst_1 = arith.constant 1.000000e-24 : f32
    %5 = vector.broadcast %cst_1 : f32 to vector<1x128xf32>
    %6 = arith.maximumf %4, %5 : vector<1x128xf32>
    %7 = math.rsqrt %6 : vector<1x128xf32>
    %8 = vector.broadcast %7 : vector<1x128xf32> to vector<32x128xf32>
    %9 = arith.mulf %1, %8 : vector<32x128xf32>
    %c0_2 = arith.constant 0 : index
    %c0_3 = arith.constant 0 : index
    %10 = vector.load %arg3[%c0_2, %c0_3] : memref<32x128xbf16, #tpu.memory_space<vmem>>, vector<32x128xbf16>
    %11 = arith.extf %10 : vector<32x128xbf16> to vector<32x128xf32>
    %12 = arith.mulf %11, %11 : vector<32x128xf32>
    %cst_4 = arith.constant dense<0.000000e+00> : vector<128xf32>
    %13 = vector.multi_reduction <add>, %12, %cst_4 [0] : vector<32x128xf32> to vector<128xf32>
    %14 = vector.shape_cast %13 : vector<128xf32> to vector<1x128xf32>
    %cst_5 = arith.constant 1.000000e-24 : f32
    %15 = vector.broadcast %cst_5 : f32 to vector<1x128xf32>
    %16 = arith.maximumf %14, %15 : vector<1x128xf32>
    %17 = math.rsqrt %16 : vector<1x128xf32>
    %18 = vector.broadcast %17 : vector<1x128xf32> to vector<32x128xf32>
    %19 = arith.mulf %11, %18 : vector<32x128xf32>
    %c0_6 = arith.constant 0 : index
    %c0_7 = arith.constant 0 : index
    %20 = vector.load %arg4[%c0_6, %c0_7] : memref<32x128xbf16, #tpu.memory_space<vmem>>, vector<32x128xbf16>
    %21 = arith.extf %20 : vector<32x128xbf16> to vector<32x128xf32>
    %22 = arith.mulf %21, %21 : vector<32x128xf32>
    %cst_8 = arith.constant dense<0.000000e+00> : vector<128xf32>
    %23 = vector.multi_reduction <add>, %22, %cst_8 [0] : vector<32x128xf32> to vector<128xf32>
    %24 = vector.shape_cast %23 : vector<128xf32> to vector<1x128xf32>
    %cst_9 = arith.constant 1.000000e-24 : f32
    %25 = vector.broadcast %cst_9 : f32 to vector<1x128xf32>
    %26 = arith.maximumf %24, %25 : vector<1x128xf32>
    %27 = math.rsqrt %26 : vector<1x128xf32>
    %28 = vector.broadcast %27 : vector<1x128xf32> to vector<32x128xf32>
    %29 = arith.mulf %21, %28 : vector<32x128xf32>
    %c0_10 = arith.constant 0 : index
    %c0_11 = arith.constant 0 : index
    %30 = vector.load %arg6[%c0_10, %c0_11] : memref<32x128xbf16, #tpu.memory_space<vmem>>, vector<32x128xbf16>
    %31 = arith.extf %30 : vector<32x128xbf16> to vector<32x128xf32>
    %32 = arith.mulf %31, %31 : vector<32x128xf32>
    %cst_12 = arith.constant dense<0.000000e+00> : vector<128xf32>
    %33 = vector.multi_reduction <add>, %32, %cst_12 [0] : vector<32x128xf32> to vector<128xf32>
    %34 = vector.shape_cast %33 : vector<128xf32> to vector<1x128xf32>
    %cst_13 = arith.constant 1.000000e-24 : f32
    %35 = vector.broadcast %cst_13 : f32 to vector<1x128xf32>
    %36 = arith.maximumf %34, %35 : vector<1x128xf32>
    %37 = math.rsqrt %36 : vector<1x128xf32>
    %38 = vector.broadcast %37 : vector<1x128xf32> to vector<32x128xf32>
    %39 = arith.mulf %31, %38 : vector<32x128xf32>
    %c0_14 = arith.constant 0 : index
    %c0_15 = arith.constant 0 : index
    %40 = vector.load %arg2[%c0_14, %c0_15] : memref<32x128xbf16, #tpu.memory_space<vmem>>, vector<32x128xbf16>
    %41 = arith.extf %40 : vector<32x128xbf16> to vector<32x128xf32>
    %42 = arith.addf %9, %41 : vector<32x128xf32>
    %43 = arith.subf %42, %19 : vector<32x128xf32>
    %c0_16 = arith.constant 0 : index
    %c0_17 = arith.constant 0 : index
    %44 = vector.load %arg5[%c0_16, %c0_17] : memref<32x128xbf16, #tpu.memory_space<vmem>>, vector<32x128xbf16>
    %45 = arith.extf %44 : vector<32x128xbf16> to vector<32x128xf32>
    %46 = arith.addf %29, %45 : vector<32x128xf32>
    %47 = arith.subf %46, %39 : vector<32x128xf32>
    %48 = arith.mulf %43, %43 : vector<32x128xf32>
    %cst_18 = arith.constant dense<0.000000e+00> : vector<128xf32>
    %49 = vector.multi_reduction <add>, %48, %cst_18 [0] : vector<32x128xf32> to vector<128xf32>
    %50 = vector.shape_cast %49 : vector<128xf32> to vector<1x128xf32>
    %51 = math.sqrt %50 : vector<1x128xf32>
    %c0_19 = arith.constant 0 : index
    %c0_20 = arith.constant 0 : index
    %52 = vector.load %arg7[%c0_19, %c0_20] : memref<2x128xf32, #tpu.memory_space<vmem>>, vector<1x128xf32>
    tpu.vector_store %arg7[%c0_19, %c0_20], %51 {strides = array<i32>} : memref<2x128xf32, #tpu.memory_space<vmem>>, vector<1x128xf32>,
    %53 = arith.mulf %47, %47 : vector<32x128xf32>
    %cst_21 = arith.constant dense<0.000000e+00> : vector<128xf32>
    %54 = vector.multi_reduction <add>, %53, %cst_21 [0] : vector<32x128xf32> to vector<128xf32>
    %55 = vector.shape_cast %54 : vector<128xf32> to vector<1x128xf32>
    %56 = math.sqrt %55 : vector<1x128xf32>
    %c1 = arith.constant 1 : index
    %c0_22 = arith.constant 0 : index
    %57 = vector.load %arg7[%c1, %c0_22] : memref<2x128xf32, #tpu.memory_space<vmem>>, vector<1x128xf32>
    tpu.vector_store %arg7[%c1, %c0_22], %56 {strides = array<i32>} : memref<2x128xf32, #tpu.memory_space<vmem>>, vector<1x128xf32>,
    return
  }
  func.func @transform_0(%arg0: i32) -> (i32, i32) {
    %c0_i32 = arith.constant 0 : i32
    %c0_i32_0 = arith.constant 0 : i32
    return %c0_i32, %arg0 : i32, i32
  }
  func.func @transform_1(%arg0: i32) -> (i32, i32) {
    %c0_i32 = arith.constant 0 : i32
    %c0_i32_0 = arith.constant 0 : i32
    return %c0_i32, %arg0 : i32, i32
  }
  func.func @transform_2(%arg0: i32) -> (i32, i32) {
    %c0_i32 = arith.constant 0 : i32
    %c0_i32_0 = arith.constant 0 : i32
    return %c0_i32, %arg0 : i32, i32
  }
  func.func @transform_3(%arg0: i32) -> (i32, i32) {
    %c0_i32 = arith.constant 0 : i32
    %c0_i32_0 = arith.constant 0 : i32
    return %c0_i32, %arg0 : i32, i32
  }
  func.func @transform_4(%arg0: i32) -> (i32, i32) {
    %c0_i32 = arith.constant 0 : i32
    %c0_i32_0 = arith.constant 0 : i32
    return %c0_i32, %arg0 : i32, i32
  }
  func.func @transform_5(%arg0: i32) -> (i32, i32) {
    %c0_i32 = arith.constant 0 : i32
    %c0_i32_0 = arith.constant 0 : i32
    return %c0_i32, %arg0 : i32, i32
  }
  func.func @transform_6(%arg0: i32) -> (i32, i32) {
    %c0_i32 = arith.constant 0 : i32
    %c0_i32_0 = arith.constant 0 : i32
    return %c0_i32, %arg0 : i32, i32
  }
}

module attributes {stable_mosaic.version = 11 : i64} {
  func.func @relpair_kernel(%arg0: i32, %arg1: memref<32x128xbf16, #tpu.memory_space<vmem>>, %arg2: memref<32x128xbf16, #tpu.memory_space<vmem>>, %arg3: memref<32x32xf32, #tpu.memory_space<vmem>>, %arg4: memref<2x128xf32, #tpu.memory_space<vmem>>) attributes {dimension_semantics = [#tpu.dimension_semantics<parallel>], iteration_bounds = array<i64: 1>, scalar_prefetch = 0 : i64, scratch_operands = 0 : i64, tpu.core_type = #tpu.core_type<tc>, window_params = [{transform_indices = @transform_0, window_bounds = array<i64: 32, 128>}, {transform_indices = @transform_1, window_bounds = array<i64: 32, 128>}, {pipeline_mode = #tpu.pipeline_mode<synchronous>, transform_indices = @transform_2, window_bounds = array<i64: 32, 32>}, {transform_indices = @transform_3, window_bounds = array<i64: 2, 128>}]} {
    %c0 = arith.constant 0 : index
    %c0_0 = arith.constant 0 : index
    %0 = vector.load %arg1[%c0, %c0_0] : memref<32x128xbf16, #tpu.memory_space<vmem>>, vector<32x128xbf16>
    %1 = arith.extf %0 : vector<32x128xbf16> to vector<32x128xf32>
    %2 = arith.mulf %1, %1 : vector<32x128xf32>
    %cst = arith.constant dense<0.000000e+00> : vector<128xf32>
    %3 = vector.multi_reduction <add>, %2, %cst [0] : vector<32x128xf32> to vector<128xf32>
    %4 = vector.shape_cast %3 : vector<128xf32> to vector<1x128xf32>
    %cst_1 = arith.constant 1.000000e-24 : f32
    %5 = vector.broadcast %cst_1 : f32 to vector<1x128xf32>
    %6 = arith.maximumf %4, %5 : vector<1x128xf32>
    %7 = math.rsqrt %6 : vector<1x128xf32>
    %8 = vector.broadcast %7 : vector<1x128xf32> to vector<32x128xf32>
    %9 = arith.mulf %1, %8 : vector<32x128xf32>
    %c0_2 = arith.constant 0 : index
    %c0_3 = arith.constant 0 : index
    %10 = vector.load %arg2[%c0_2, %c0_3] : memref<32x128xbf16, #tpu.memory_space<vmem>>, vector<32x128xbf16>
    %11 = arith.extf %10 : vector<32x128xbf16> to vector<32x128xf32>
    %12 = arith.mulf %11, %11 : vector<32x128xf32>
    %cst_4 = arith.constant dense<0.000000e+00> : vector<128xf32>
    %13 = vector.multi_reduction <add>, %12, %cst_4 [0] : vector<32x128xf32> to vector<128xf32>
    %14 = vector.shape_cast %13 : vector<128xf32> to vector<1x128xf32>
    %cst_5 = arith.constant 1.000000e-24 : f32
    %15 = vector.broadcast %cst_5 : f32 to vector<1x128xf32>
    %16 = arith.maximumf %14, %15 : vector<1x128xf32>
    %17 = math.rsqrt %16 : vector<1x128xf32>
    %18 = vector.broadcast %17 : vector<1x128xf32> to vector<32x128xf32>
    %19 = arith.mulf %11, %18 : vector<32x128xf32>
    %c0_6 = arith.constant 0 : index
    %c0_7 = arith.constant 0 : index
    %20 = vector.load %arg3[%c0_6, %c0_7] : memref<32x32xf32, #tpu.memory_space<vmem>>, vector<32x32xf32>
    %cst_8 = arith.constant dense<0.000000e+00> : vector<32x128xf32>
    %21 = tpu.matmul %20, %9, %cst_8 {dimension_numbers = #tpu.dot_dimension_numbers<[1], [0], [0], [1], [0, 0, 1, 1], [], []>} : vector<32x32xf32>, vector<32x128xf32>, vector<32x128xf32> -> vector<32x128xf32>
    %cst_9 = arith.constant dense<0.000000e+00> : vector<32x128xf32>
    %22 = tpu.matmul %20, %19, %cst_9 {dimension_numbers = #tpu.dot_dimension_numbers<[1], [0], [0], [1], [0, 0, 1, 1], [], []>} : vector<32x32xf32>, vector<32x128xf32>, vector<32x128xf32> -> vector<32x128xf32>
    %23 = arith.subf %21, %19 : vector<32x128xf32>
    %24 = arith.mulf %23, %23 : vector<32x128xf32>
    %cst_10 = arith.constant dense<0.000000e+00> : vector<128xf32>
    %25 = vector.multi_reduction <add>, %24, %cst_10 [0] : vector<32x128xf32> to vector<128xf32>
    %26 = vector.shape_cast %25 : vector<128xf32> to vector<1x128xf32>
    %27 = math.sqrt %26 : vector<1x128xf32>
    %c0_11 = arith.constant 0 : index
    %c0_12 = arith.constant 0 : index
    %28 = vector.load %arg4[%c0_11, %c0_12] : memref<2x128xf32, #tpu.memory_space<vmem>>, vector<1x128xf32>
    tpu.vector_store %arg4[%c0_11, %c0_12], %27 {strides = array<i32>} : memref<2x128xf32, #tpu.memory_space<vmem>>, vector<1x128xf32>,
    %29 = arith.subf %22, %9 : vector<32x128xf32>
    %30 = arith.mulf %29, %29 : vector<32x128xf32>
    %cst_13 = arith.constant dense<0.000000e+00> : vector<128xf32>
    %31 = vector.multi_reduction <add>, %30, %cst_13 [0] : vector<32x128xf32> to vector<128xf32>
    %32 = vector.shape_cast %31 : vector<128xf32> to vector<1x128xf32>
    %33 = math.sqrt %32 : vector<1x128xf32>
    %c1 = arith.constant 1 : index
    %c0_14 = arith.constant 0 : index
    %34 = vector.load %arg4[%c1, %c0_14] : memref<2x128xf32, #tpu.memory_space<vmem>>, vector<1x128xf32>
    tpu.vector_store %arg4[%c1, %c0_14], %33 {strides = array<i32>} : memref<2x128xf32, #tpu.memory_space<vmem>>, vector<1x128xf32>,
    return
  }
  func.func @transform_0(%arg0: i32) -> (i32, i32) {
    %c0_i32 = arith.constant 0 : i32
    %c0_i32_0 = arith.constant 0 : i32
    return %c0_i32, %arg0 : i32, i32
  }
  func.func @transform_1(%arg0: i32) -> (i32, i32) {
    %c0_i32 = arith.constant 0 : i32
    %c0_i32_0 = arith.constant 0 : i32
    return %c0_i32, %arg0 : i32, i32
  }
  func.func @transform_2(%arg0: i32) -> (i32, i32) {
    %c0_i32 = arith.constant 0 : i32
    %c0_i32_0 = arith.constant 0 : i32
    %c0_i32_1 = arith.constant 0 : i32
    return %c0_i32, %c0_i32_0 : i32, i32
  }
  func.func @transform_3(%arg0: i32) -> (i32, i32) {
    %c0_i32 = arith.constant 0 : i32
    %c0_i32_0 = arith.constant 0 : i32
    return %c0_i32, %arg0 : i32, i32
  }
}

</mosaic_0001>

<llo_original>
// kernel: transmit_forward.3
$region0: #{transmit_forward.3}
  #allocation0 [shape = 'u32[]', space=smem, size = 0x4, offset = 0x4, fixed_abs, tag = 'smem constant byte address 0x4 - core index']
  #allocation1 [shape = 'u32[144,128]{1,0:T(1,128)}', space=vmem, size = 0x12000, scoped, tag = 'internal scratch']
  %s0 = inlined_call_operand.vmem [shape: bf16[32,128], index: 0, kind: input, shape index: {}]
  %s1 = inlined_call_operand.vmem [shape: bf16[32,128], index: 1, kind: input, shape index: {}]
  %s2 = inlined_call_operand.vmem [shape: f32[32,32], index: 2, kind: input, shape index: {}]
  %s3 = inlined_call_operand.vmem [shape: f32[2,128], index: 3, kind: output, shape index: {}]
  %s4 = sld [smem:[#allocation0]]
  $region22: #{transmit_forward.3} parent=0
    _
  %s6 = ssub.s32 1, %s4
  %s7 = scalar_select 0, %s6, %s4
  // Predicated region
  $region2: #{transmit_forward.3} parent=0 // pred_check
    _
  $region3: #{transmit_forward.3} parent=0 // pred_check_branch
    %9 = sbr.rel (0) target = $region5
  $region4: #{transmit_forward.3} parent=0 // pred_region
    _
  $region5: #{transmit_forward.3} parent=0 // pred_fallthru
    _
  // Predicated region
  $region6: #{transmit_forward.3} parent=0 // pred_check
    _
  $region7: #{transmit_forward.3} parent=0 // pred_check_branch
    %11 = sbr.rel (0) target = $region9
  $region8: #{transmit_forward.3} parent=0 // pred_region
    _
  $region9: #{transmit_forward.3} parent=0 // pred_fallthru
    _
  // Predicated region
  $region10: #{transmit_forward.3} parent=0 // pred_check
    _
  $region11: #{transmit_forward.3} parent=0 // pred_check_branch
    %13 = sbr.rel (0) target = $region13
  $region12: #{transmit_forward.3} parent=0 // pred_region
    _
  $region13: #{transmit_forward.3} parent=0 // pred_fallthru
    _
  %v14 = vld [vmem:[%s0] sm:$0xf]
  %v15 = vld [vmem:[%s0 + $0x4] sm:$0xf]
  %v16 = vld [vmem:[%s0 + $0x8] sm:$0xf]
  %v17 = vld [vmem:[%s0 + $0xc] sm:$0xf]
  %v18 = vunpack.c.l.bf16 %v14
  %v19 = vunpack.c.l.bf16 %v15
  %v20 = vunpack.c.l.bf16 %v16
  %v21 = vunpack.c.l.bf16 %v17
  %v22 = vmul.f32 %v18, %v18
  %v23 = vmul.f32 %v19, %v19
  %v24 = vmul.f32 %v20, %v20
  %v25 = vmul.f32 %v21, %v21
  %v26 = vadd.f32 %v22, %v23
  %v27 = vadd.f32 %v26, %v24
  %v28 = vadd.f32 %v27, %v25
  %v29 = vrot.slane %v28, 4
  %v30 = vadd.f32 %v28, %v29
  %v31 = vrot.slane %v30, 2
  %v32 = vadd.f32 %v30, %v31
  %v33 = vrot.slane %v32, 1
  %v34 = vadd.f32 %v32, %v33
  %v35 = vmax.f32 %v34, 1e-24
  %v36 = vrsqrt.pop %v35
  %v37 = vmul.f32 %v18, %v36
  %v38 = vmul.f32 %v19, %v36
  %v39 = vmul.f32 %v20, %v36
  %v40 = vmul.f32 %v21, %v36
  %v41 = vld [vmem:[%s1] sm:$0xf]
  %v42 = vld [vmem:[%s1 + $0x4] sm:$0xf]
  %v43 = vld [vmem:[%s1 + $0x8] sm:$0xf]
  %v44 = vld [vmem:[%s1 + $0xc] sm:$0xf]
  %v45 = vunpack.c.l.bf16 %v41
  %v46 = vunpack.c.l.bf16 %v42
  %v47 = vunpack.c.l.bf16 %v43
  %v48 = vunpack.c.l.bf16 %v44
  %v49 = vmul.f32 %v45, %v45
  %v50 = vmul.f32 %v46, %v46
  %v51 = vmul.f32 %v47, %v47
  %v52 = vmul.f32 %v48, %v48
  %v53 = vadd.f32 %v49, %v50
  %v54 = vadd.f32 %v53, %v51
  %v55 = vadd.f32 %v54, %v52
  %v56 = vrot.slane %v55, 4
  %v57 = vadd.f32 %v55, %v56
  %v58 = vrot.slane %v57, 2
  %v59 = vadd.f32 %v57, %v58
  %v60 = vrot.slane %v59, 1
  %v61 = vadd.f32 %v59, %v60
  %v62 = vmax.f32 %v61, 1e-24
  %v63 = vrsqrt.pop %v62
  %v64 = vmul.f32 %v45, %v63
  %v65 = vmul.f32 %v46, %v63
  %v66 = vmul.f32 %v47, %v63
  %v67 = vmul.f32 %v48, %v63
  %v68 = vld [vmem:[%s2] sm:$0xff]
  %v69 = vld [vmem:[%s2 + $0x8] sm:$0xff]
  %v70 = vld [vmem:[%s2 + $0x10] sm:$0xff]
  %v71 = vld [vmem:[%s2 + $0x18] sm:$0xff]
  %vm72 = vcmask 261120
  %v74 = vsel %vm72, %v68, 0
  %v77 = vsel %vm72, %v69, 0
  %v80 = vsel %vm72, %v70, 0
  %v83 = vsel %vm72, %v71, 0
  %85 = vmatprep.subr.mxu0 0.0
  %86 = vmatpush1.msra.mxu0 %v37
  %87 = vmatprep.subr.mxu0 0.0
  %88 = vmatpush1.msra.mxu0 %v38
  %89 = vmatprep.subr.mxu0 0.0
  %90 = vmatpush1.msra.mxu0 %v39
  %91 = vmatprep.subr.mxu0 0.0
  %92 = vmatpush1.msra.mxu0 %v40
  %93 = vmatprep.subr.mxu0 0.0
  %94 = vmatpush1.msra.mxu0 0.0
  %95 = vmatprep.subr.mxu0 0.0
  %96 = vmatpush1.msra.mxu0 0.0
  %97 = vmatprep.subr.mxu0 0.0
  %98 = vmatpush1.msra.mxu0 0.0
  %99 = vmatprep.subr.mxu0 0.0
  %100 = vmatpush1.msra.mxu0 0.0
  %101 = vmatprep.subr.mxu0 0.0
  %102 = vmatpush1.msra.mxu0 0.0
  %103 = vmatprep.subr.mxu0 0.0
  %104 = vmatpush1.msra.mxu0 0.0
  %105 = vmatprep.subr.mxu0 0.0
  %106 = vmatpush1.msra.mxu0 0.0
  %107 = vmatprep.subr.mxu0 0.0
  %108 = vmatpush1.msra.mxu0 0.0
  %109 = vmatprep.subr.mxu0 0.0
  %110 = vmatpush1.msra.mxu0 0.0
  %111 = vmatprep.subr.mxu0 0.0
  %112 = vmatpush1.msra.mxu0 0.0
  %113 = vmatprep.subr.mxu0 0.0
  %114 = vmatpush1.msra.mxu0 0.0
  %115 = vmatprep.subr.mxu0 0.0
  %116 = vmatpush1.msra.mxu0 0.0
  %117 = vmatprep.subr.mxu0 0.0
  %118 = vmatpush1.msra.mxu0 0.0
  %119 = vmatprep.subr.mxu0 0.0
  %120 = vmatpush1.msra.mxu0 0.0
  %121 = vmatprep.subr.mxu0 0.0
  %122 = vmatpush1.msra.mxu0 0.0
  %123 = vmatprep.subr.mxu0 0.0
  %124 = vmatpush1.msra.mxu0 0.0
  %125 = vmatprep.subr.mxu0 0.0
  %126 = vmatpush1.msra.mxu0 0.0
  %127 = vmatprep.subr.mxu0 0.0
  %128 = vmatpush1.msra.mxu0 0.0
  %129 = vmatprep.subr.mxu0 0.0
  %130 = vmatpush1.msra.mxu0 0.0
  %131 = vmatprep.subr.mxu0 0.0
  %132 = vmatpush1.msra.mxu0 0.0
  %133 = vmatprep.subr.mxu0 0.0
  %134 = vmatpush1.msra.mxu0 0.0
  %135 = vmatprep.subr.mxu0 0.0
  %136 = vmatpush1.msra.mxu0 0.0
  %137 = vmatprep.subr.mxu0 0.0
  %138 = vmatpush1.msra.mxu0 0.0
  %139 = vmatprep.subr.mxu0 0.0
  %140 = vmatpush1.msra.mxu0 0.0
  %141 = vmatprep.subr.mxu0 0.0
  %142 = vmatpush1.msra.mxu0 0.0
  %143 = vmatprep.subr.mxu0 0.0
  %144 = vmatpush1.msra.mxu0 0.0
  %145 = vmatprep.subr.mxu0 0.0
  %146 = vmatpush1.msra.mxu0 0.0
  %147 = vmatprep.subr.mxu0 0.0
  %148 = vmatpush1.msra.mxu0 0.0
  %149 = vmatprep.mubr.f32.mxu0 0.0
  %150 = vmatmul.mubr.f32.gmra.mrb[0].mxu0 %v74
  %v151 = vpop.f32.mrb[0].mxu0
  %v152 = vadd.f32 0.0, %v151
  %v153 = vpop.f32.mrb[0].mxu0
  %154 = vmatprep.mubr.f32.mxu0 0.0
  %155 = vmatmul.mubr.f32.gmra.mrb[0].mxu0 %v77
  %v156 = vpop.f32.mrb[0].mxu0
  %v157 = vadd.f32 0.0, %v156
  %v158 = vpop.f32.mrb[0].mxu0
  %159 = vmatprep.mubr.f32.mxu0 0.0
  %160 = vmatmul.mubr.f32.gmra.mrb[0].mxu0 %v80
  %v161 = vpop.f32.mrb[0].mxu0
  %v162 = vadd.f32 0.0, %v161
  %v163 = vpop.f32.mrb[0].mxu0
  %164 = vmatprep.mubr.f32.mxu0 0.0
  %165 = vmatmul.mubr.f32.gmra.mrb[0].mxu0 %v83
  %v166 = vpop.f32.mrb[0].mxu0
  %v167 = vadd.f32 0.0, %v166
  %v168 = vpop.f32.mrb[0].mxu0
  %169 = vdwg.mxu0
  %170 = vmatprep.subr.mxu0 0.0
  %171 = vmatpush1.msra.mxu0 %v64
  %172 = vmatprep.subr.mxu0 0.0
  %173 = vmatpush1.msra.mxu0 %v65
  %174 = vmatprep.subr.mxu0 0.0
  %175 = vmatpush1.msra.mxu0 %v66
  %176 = vmatprep.subr.mxu0 0.0
  %177 = vmatpush1.msra.mxu0 %v67
  %178 = vmatprep.subr.mxu0 0.0
  %179 = vmatpush1.msra.mxu0 0.0
  %180 = vmatprep.subr.mxu0 0.0
  %181 = vmatpush1.msra.mxu0 0.0
  %182 = vmatprep.subr.mxu0 0.0
  %183 = vmatpush1.msra.mxu0 0.0
  %184 = vmatprep.subr.mxu0 0.0
  %185 = vmatpush1.msra.mxu0 0.0
  %186 = vmatprep.subr.mxu0 0.0
  %187 = vmatpush1.msra.mxu0 0.0
  %188 = vmatprep.subr.mxu0 0.0
  %189 = vmatpush1.msra.mxu0 0.0
  %190 = vmatprep.subr.mxu0 0.0
  %191 = vmatpush1.msra.mxu0 0.0
  %192 = vmatprep.subr.mxu0 0.0
  %193 = vmatpush1.msra.mxu0 0.0
  %194 = vmatprep.subr.mxu0 0.0
  %195 = vmatpush1.msra.mxu0 0.0
  %196 = vmatprep.subr.mxu0 0.0
  %197 = vmatpush1.msra.mxu0 0.0
  %198 = vmatprep.subr.mxu0 0.0
  %199 = vmatpush1.msra.mxu0 0.0
  %200 = vmatprep.subr.mxu0 0.0
  %201 = vmatpush1.msra.mxu0 0.0
  %202 = vmatprep.subr.mxu0 0.0
  %203 = vmatpush1.msra.mxu0 0.0
  %204 = vmatprep.subr.mxu0 0.0
  %205 = vmatpush1.msra.mxu0 0.0
  %206 = vmatprep.subr.mxu0 0.0
  %207 = vmatpush1.msra.mxu0 0.0
  %208 = vmatprep.subr.mxu0 0.0
  %209 = vmatpush1.msra.mxu0 0.0
  %210 = vmatprep.subr.mxu0 0.0
  %211 = vmatpush1.msra.mxu0 0.0
  %212 = vmatprep.subr.mxu0 0.0
  %213 = vmatpush1.msra.mxu0 0.0
  %214 = vmatprep.subr.mxu0 0.0
  %215 = vmatpush1.msra.mxu0 0.0
  %216 = vmatprep.subr.mxu0 0.0
  %217 = vmatpush1.msra.mxu0 0.0
  %218 = vmatprep.subr.mxu0 0.0
  %219 = vmatpush1.msra.mxu0 0.0
  %220 = vmatprep.subr.mxu0 0.0
  %221 = vmatpush1.msra.mxu0 0.0
  %222 = vmatprep.subr.mxu0 0.0
  %223 = vmatpush1.msra.mxu0 0.0
  %224 = vmatprep.subr.mxu0 0.0
  %225 = vmatpush1.msra.mxu0 0.0
  %226 = vmatprep.subr.mxu0 0.0
  %227 = vmatpush1.msra.mxu0 0.0
  %228 = vmatprep.subr.mxu0 0.0
  %229 = vmatpush1.msra.mxu0 0.0
  %230 = vmatprep.subr.mxu0 0.0
  %231 = vmatpush1.msra.mxu0 0.0
  %232 = vmatprep.subr.mxu0 0.0
  %233 = vmatpush1.msra.mxu0 0.0
  %234 = vmatprep.mubr.f32.mxu0 0.0
  %235 = vmatmul.mubr.f32.gmra.mrb[0].mxu0 %v74
  %v236 = vpop.f32.mrb[0].mxu0
  %v237 = vadd.f32 0.0, %v236
  %v238 = vpop.f32.mrb[0].mxu0
  %239 = vmatprep.mubr.f32.mxu0 0.0
  %240 = vmatmul.mubr.f32.gmra.mrb[0].mxu0 %v77
  %v241 = vpop.f32.mrb[0].mxu0
  %v242 = vadd.f32 0.0, %v241
  %v243 = vpop.f32.mrb[0].mxu0
  %244 = vmatprep.mubr.f32.mxu0 0.0
  %245 = vmatmul.mubr.f32.gmra.mrb[0].mxu0 %v80
  %v246 = vpop.f32.mrb[0].mxu0
  %v247 = vadd.f32 0.0, %v246
  %v248 = vpop.f32.mrb[0].mxu0
  %249 = vmatprep.mubr.f32.mxu0 0.0
  %250 = vmatmul.mubr.f32.gmra.mrb[0].mxu0 %v83
  %v251 = vpop.f32.mrb[0].mxu0
  %v252 = vadd.f32 0.0, %v251
  %v253 = vpop.f32.mrb[0].mxu0
  %254 = vdwg.mxu0
  %v255 = vsub.f32 %v152, %v64
  %v256 = vsub.f32 %v157, %v65
  %v257 = vsub.f32 %v162, %v66
  %v258 = vsub.f32 %v167, %v67
  %v259 = vmul.f32 %v255, %v255
  %v260 = vmul.f32 %v256, %v256
  %v261 = vmul.f32 %v257, %v257
  %v262 = vmul.f32 %v258, %v258
  %v263 = vadd.f32 %v259, %v260
  %v264 = vadd.f32 %v263, %v261
  %v265 = vadd.f32 %v264, %v262
  %v266 = vrot.slane %v265, 4
  %v267 = vadd.f32 %v265, %v266
  %v268 = vrot.slane %v267, 2
  %v269 = vadd.f32 %v267, %v268
  %v270 = vrot.slane %v269, 1
  %v271 = vadd.f32 %v269, %v270
  %v272 = vrsqrt.pop %v271
  %v273 = vmul.f32 %v271, %v272
  %vm274 = vcmp.eq.f32.partialorder %v271, inf
  %v275 = vsel %vm274, %v271, %v273
  %vm276 = vcmp.eq.f32.partialorder %v271, 0.0
  %v277 = vand.u32 %v271, 2147483648
  %v278 = vsel %vm276, %v277, %v275
  %279 = vst [vmem:[%s3] sm:$0x1] %v278
  %v280 = vsub.f32 %v237, %v37
  %v281 = vsub.f32 %v242, %v38
  %v282 = vsub.f32 %v247, %v39
  %v283 = vsub.f32 %v252, %v40
  %v284 = vmul.f32 %v280, %v280
  %v285 = vmul.f32 %v281, %v281
  %v286 = vmul.f32 %v282, %v282
  %v287 = vmul.f32 %v283, %v283
  %v288 = vadd.f32 %v284, %v285
  %v289 = vadd.f32 %v288, %v286
  %v290 = vadd.f32 %v289, %v287
  %v291 = vrot.slane %v290, 4
  %v292 = vadd.f32 %v290, %v291
  %v293 = vrot.slane %v292, 2
  %v294 = vadd.f32 %v292, %v293
  %v295 = vrot.slane %v294, 1
  %v296 = vadd.f32 %v294, %v295
  %v297 = vrsqrt.pop %v296
  %v298 = vmul.f32 %v296, %v297
  %vm299 = vcmp.eq.f32.partialorder %v296, inf
  %v300 = vsel %vm299, %v296, %v298
  %vm301 = vcmp.eq.f32.partialorder %v296, 0.0
  %v302 = vand.u32 %v296, 2147483648
  %v303 = vsel %vm301, %v302, %v300
  %304 = vst [vmem:[%s3 + $0x1] sm:$0x1] %v303
  // Predicated region
  $region14: #{transmit_forward.3} parent=0 // pred_check
    _
  $region15: #{transmit_forward.3} parent=0 // pred_check_branch
    %306 = sbr.rel (0) target = $region17
  $region16: #{transmit_forward.3} parent=0 // pred_region
    _
  $region17: #{transmit_forward.3} parent=0 // pred_fallthru
    _
  // Predicated region
  $region18: #{transmit_forward.3} parent=0 // pred_check
    _
  $region19: #{transmit_forward.3} parent=0 // pred_check_branch
    %308 = sbr.rel (0) target = $region21
  $region20: #{transmit_forward.3} parent=0 // pred_region
    _
  $region21: #{transmit_forward.3} parent=0 // pred_fallthru
    _

// kernel: transmit_forward.2
$region0: #{transmit_forward.2}
  #allocation0 [shape = 'u32[]', space=smem, size = 0x4, offset = 0x4, fixed_abs, tag = 'smem constant byte address 0x4 - core index']
  #allocation1 [shape = 'u32[144,128]{1,0:T(1,128)}', space=vmem, size = 0x12000, scoped, tag = 'internal scratch']
  %s0 = inlined_call_operand.vmem [shape: bf16[32,128], index: 0, kind: input, shape index: {}]
  %s1 = inlined_call_operand.vmem [shape: bf16[32,128], index: 1, kind: input, shape index: {}]
  %s2 = inlined_call_operand.vmem [shape: bf16[32,128], index: 2, kind: input, shape index: {}]
  %s3 = inlined_call_operand.vmem [shape: bf16[32,128], index: 3, kind: input, shape index: {}]
  %s4 = inlined_call_operand.vmem [shape: bf16[32,128], index: 4, kind: input, shape index: {}]
  %s5 = inlined_call_operand.vmem [shape: bf16[32,128], index: 5, kind: input, shape index: {}]
  %s6 = inlined_call_operand.vmem [shape: f32[2,128], index: 6, kind: output, shape index: {}]
  %s7 = sld [smem:[#allocation0]]
  $region34: #{transmit_forward.2} parent=0
    _
  %s9 = ssub.s32 1, %s7
  %s10 = scalar_select 0, %s9, %s7
  // Predicated region
  $region2: #{transmit_forward.2} parent=0 // pred_check
    _
  $region3: #{transmit_forward.2} parent=0 // pred_check_branch
    %12 = sbr.rel (0) target = $region5
  $region4: #{transmit_forward.2} parent=0 // pred_region
    _
  $region5: #{transmit_forward.2} parent=0 // pred_fallthru
    _
  // Predicated region
  $region6: #{transmit_forward.2} parent=0 // pred_check
    _
  $region7: #{transmit_forward.2} parent=0 // pred_check_branch
    %14 = sbr.rel (0) target = $region9
  $region8: #{transmit_forward.2} parent=0 // pred_region
    _
  $region9: #{transmit_forward.2} parent=0 // pred_fallthru
    _
  // Predicated region
  $region10: #{transmit_forward.2} parent=0 // pred_check
    _
  $region11: #{transmit_forward.2} parent=0 // pred_check_branch
    %16 = sbr.rel (0) target = $region13
  $region12: #{transmit_forward.2} parent=0 // pred_region
    _
  $region13: #{transmit_forward.2} parent=0 // pred_fallthru
    _
  // Predicated region
  $region14: #{transmit_forward.2} parent=0 // pred_check
    _
  $region15: #{transmit_forward.2} parent=0 // pred_check_branch
    %18 = sbr.rel (0) target = $region17
  $region16: #{transmit_forward.2} parent=0 // pred_region
    _
  $region17: #{transmit_forward.2} parent=0 // pred_fallthru
    _
  // Predicated region
  $region18: #{transmit_forward.2} parent=0 // pred_check
    _
  $region19: #{transmit_forward.2} parent=0 // pred_check_branch
    %20 = sbr.rel (0) target = $region21
  $region20: #{transmit_forward.2} parent=0 // pred_region
    _
  $region21: #{transmit_forward.2} parent=0 // pred_fallthru
    _
  // Predicated region
  $region22: #{transmit_forward.2} parent=0 // pred_check
    _
  $region23: #{transmit_forward.2} parent=0 // pred_check_branch
    %22 = sbr.rel (0) target = $region25
  $region24: #{transmit_forward.2} parent=0 // pred_region
    _
  $region25: #{transmit_forward.2} parent=0 // pred_fallthru
    _
  %v23 = vld [vmem:[%s0] sm:$0xf]
  %v24 = vld [vmem:[%s0 + $0x4] sm:$0xf]
  %v25 = vld [vmem:[%s0 + $0x8] sm:$0xf]
  %v26 = vld [vmem:[%s0 + $0xc] sm:$0xf]
  %v27 = vunpack.c.l.bf16 %v23
  %v28 = vunpack.c.l.bf16 %v24
  %v29 = vunpack.c.l.bf16 %v25
  %v30 = vunpack.c.l.bf16 %v26
  %v31 = vmul.f32 %v27, %v27
  %v32 = vmul.f32 %v28, %v28
  %v33 = vmul.f32 %v29, %v29
  %v34 = vmul.f32 %v30, %v30
  %v35 = vadd.f32 %v31, %v32
  %v36 = vadd.f32 %v35, %v33
  %v37 = vadd.f32 %v36, %v34
  %v38 = vrot.slane %v37, 4
  %v39 = vadd.f32 %v37, %v38
  %v40 = vrot.slane %v39, 2
  %v41 = vadd.f32 %v39, %v40
  %v42 = vrot.slane %v41, 1
  %v43 = vadd.f32 %v41, %v42
  %v44 = vmax.f32 %v43, 1e-24
  %v45 = vrsqrt.pop %v44
  %v46 = vmul.f32 %v27, %v45
  %v47 = vmul.f32 %v28, %v45
  %v48 = vmul.f32 %v29, %v45
  %v49 = vmul.f32 %v30, %v45
  %v50 = vld [vmem:[%s2] sm:$0xf]
  %v51 = vld [vmem:[%s2 + $0x4] sm:$0xf]
  %v52 = vld [vmem:[%s2 + $0x8] sm:$0xf]
  %v53 = vld [vmem:[%s2 + $0xc] sm:$0xf]
  %v54 = vunpack.c.l.bf16 %v50
  %v55 = vunpack.c.l.bf16 %v51
  %v56 = vunpack.c.l.bf16 %v52
  %v57 = vunpack.c.l.bf16 %v53
  %v58 = vmul.f32 %v54, %v54
  %v59 = vmul.f32 %v55, %v55
  %v60 = vmul.f32 %v56, %v56
  %v61 = vmul.f32 %v57, %v57
  %v62 = vadd.f32 %v58, %v59
  %v63 = vadd.f32 %v62, %v60
  %v64 = vadd.f32 %v63, %v61
  %v65 = vrot.slane %v64, 4
  %v66 = vadd.f32 %v64, %v65
  %v67 = vrot.slane %v66, 2
  %v68 = vadd.f32 %v66, %v67
  %v69 = vrot.slane %v68, 1
  %v70 = vadd.f32 %v68, %v69
  %v71 = vmax.f32 %v70, 1e-24
  %v72 = vrsqrt.pop %v71
  %v73 = vmul.f32 %v54, %v72
  %v74 = vmul.f32 %v55, %v72
  %v75 = vmul.f32 %v56, %v72
  %v76 = vmul.f32 %v57, %v72
  %v77 = vld [vmem:[%s3] sm:$0xf]
  %v78 = vld [vmem:[%s3 + $0x4] sm:$0xf]
  %v79 = vld [vmem:[%s3 + $0x8] sm:$0xf]
  %v80 = vld [vmem:[%s3 + $0xc] sm:$0xf]
  %v81 = vunpack.c.l.bf16 %v77
  %v82 = vunpack.c.l.bf16 %v78
  %v83 = vunpack.c.l.bf16 %v79
  %v84 = vunpack.c.l.bf16 %v80
  %v85 = vmul.f32 %v81, %v81
  %v86 = vmul.f32 %v82, %v82
  %v87 = vmul.f32 %v83, %v83
  %v88 = vmul.f32 %v84, %v84
  %v89 = vadd.f32 %v85, %v86
  %v90 = vadd.f32 %v89, %v87
  %v91 = vadd.f32 %v90, %v88
  %v92 = vrot.slane %v91, 4
  %v93 = vadd.f32 %v91, %v92
  %v94 = vrot.slane %v93, 2
  %v95 = vadd.f32 %v93, %v94
  %v96 = vrot.slane %v95, 1
  %v97 = vadd.f32 %v95, %v96
  %v98 = vmax.f32 %v97, 1e-24
  %v99 = vrsqrt.pop %v98
  %v100 = vmul.f32 %v81, %v99
  %v101 = vmul.f32 %v82, %v99
  %v102 = vmul.f32 %v83, %v99
  %v103 = vmul.f32 %v84, %v99
  %v104 = vld [vmem:[%s5] sm:$0xf]
  %v105 = vld [vmem:[%s5 + $0x4] sm:$0xf]
  %v106 = vld [vmem:[%s5 + $0x8] sm:$0xf]
  %v107 = vld [vmem:[%s5 + $0xc] sm:$0xf]
  %v108 = vunpack.c.l.bf16 %v104
  %v109 = vunpack.c.l.bf16 %v105
  %v110 = vunpack.c.l.bf16 %v106
  %v111 = vunpack.c.l.bf16 %v107
  %v112 = vmul.f32 %v108, %v108
  %v113 = vmul.f32 %v109, %v109
  %v114 = vmul.f32 %v110, %v110
  %v115 = vmul.f32 %v111, %v111
  %v116 = vadd.f32 %v112, %v113
  %v117 = vadd.f32 %v116, %v114
  %v118 = vadd.f32 %v117, %v115
  %v119 = vrot.slane %v118, 4
  %v120 = vadd.f32 %v118, %v119
  %v121 = vrot.slane %v120, 2
  %v122 = vadd.f32 %v120, %v121
  %v123 = vrot.slane %v122, 1
  %v124 = vadd.f32 %v122, %v123
  %v125 = vmax.f32 %v124, 1e-24
  %v126 = vrsqrt.pop %v125
  %v127 = vmul.f32 %v108, %v126
  %v128 = vmul.f32 %v109, %v126
  %v129 = vmul.f32 %v110, %v126
  %v130 = vmul.f32 %v111, %v126
  %v131 = vld [vmem:[%s1] sm:$0xf]
  %v132 = vld [vmem:[%s1 + $0x4] sm:$0xf]
  %v133 = vld [vmem:[%s1 + $0x8] sm:$0xf]
  %v134 = vld [vmem:[%s1 + $0xc] sm:$0xf]
  %v135 = vunpack.c.l.bf16 %v131
  %v136 = vunpack.c.l.bf16 %v132
  %v137 = vunpack.c.l.bf16 %v133
  %v138 = vunpack.c.l.bf16 %v134
  %v139 = vadd.f32 %v46, %v135
  %v140 = vadd.f32 %v47, %v136
  %v141 = vadd.f32 %v48, %v137
  %v142 = vadd.f32 %v49, %v138
  %v143 = vsub.f32 %v139, %v73
  %v144 = vsub.f32 %v140, %v74
  %v145 = vsub.f32 %v141, %v75
  %v146 = vsub.f32 %v142, %v76
  %v147 = vld [vmem:[%s4] sm:$0xf]
  %v148 = vld [vmem:[%s4 + $0x4] sm:$0xf]
  %v149 = vld [vmem:[%s4 + $0x8] sm:$0xf]
  %v150 = vld [vmem:[%s4 + $0xc] sm:$0xf]
  %v151 = vunpack.c.l.bf16 %v147
  %v152 = vunpack.c.l.bf16 %v148
  %v153 = vunpack.c.l.bf16 %v149
  %v154 = vunpack.c.l.bf16 %v150
  %v155 = vadd.f32 %v100, %v151
  %v156 = vadd.f32 %v101, %v152
  %v157 = vadd.f32 %v102, %v153
  %v158 = vadd.f32 %v103, %v154
  %v159 = vsub.f32 %v155, %v127
  %v160 = vsub.f32 %v156, %v128
  %v161 = vsub.f32 %v157, %v129
  %v162 = vsub.f32 %v158, %v130
  %v163 = vmul.f32 %v143, %v143
  %v164 = vmul.f32 %v144, %v144
  %v165 = vmul.f32 %v145, %v145
  %v166 = vmul.f32 %v146, %v146
  %v167 = vadd.f32 %v163, %v164
  %v168 = vadd.f32 %v167, %v165
  %v169 = vadd.f32 %v168, %v166
  %v170 = vrot.slane %v169, 4
  %v171 = vadd.f32 %v169, %v170
  %v172 = vrot.slane %v171, 2
  %v173 = vadd.f32 %v171, %v172
  %v174 = vrot.slane %v173, 1
  %v175 = vadd.f32 %v173, %v174
  %v176 = vrsqrt.pop %v175
  %v177 = vmul.f32 %v175, %v176
  %vm178 = vcmp.eq.f32.partialorder %v175, inf
  %v179 = vsel %vm178, %v175, %v177
  %vm180 = vcmp.eq.f32.partialorder %v175, 0.0
  %v181 = vand.u32 %v175, 2147483648
  %v182 = vsel %vm180, %v181, %v179
  %183 = vst [vmem:[%s6] sm:$0x1] %v182
  %v184 = vmul.f32 %v159, %v159
  %v185 = vmul.f32 %v160, %v160
  %v186 = vmul.f32 %v161, %v161
  %v187 = vmul.f32 %v162, %v162
  %v188 = vadd.f32 %v184, %v185
  %v189 = vadd.f32 %v188, %v186
  %v190 = vadd.f32 %v189, %v187
  %v191 = vrot.slane %v190, 4
  %v192 = vadd.f32 %v190, %v191
  %v193 = vrot.slane %v192, 2
  %v194 = vadd.f32 %v192, %v193
  %v195 = vrot.slane %v194, 1
  %v196 = vadd.f32 %v194, %v195
  %v197 = vrsqrt.pop %v196
  %v198 = vmul.f32 %v196, %v197
  %vm199 = vcmp.eq.f32.partialorder %v196, inf
  %v200 = vsel %vm199, %v196, %v198
  %vm201 = vcmp.eq.f32.partialorder %v196, 0.0
  %v202 = vand.u32 %v196, 2147483648
  %v203 = vsel %vm201, %v202, %v200
  %204 = vst [vmem:[%s6 + $0x1] sm:$0x1] %v203
  // Predicated region
  $region26: #{transmit_forward.2} parent=0 // pred_check
    _
  $region27: #{transmit_forward.2} parent=0 // pred_check_branch
    %206 = sbr.rel (0) target = $region29
  $region28: #{transmit_forward.2} parent=0 // pred_region
    _
  $region29: #{transmit_forward.2} parent=0 // pred_fallthru
    _
  // Predicated region
  $region30: #{transmit_forward.2} parent=0 // pred_check
    _
  $region31: #{transmit_forward.2} parent=0 // pred_check_branch
    %208 = sbr.rel (0) target = $region33
  $region32: #{transmit_forward.2} parent=0 // pred_region
    _
  $region33: #{transmit_forward.2} parent=0 // pred_fallthru
    _

</llo_original>
